<compile_context>
chip_gen: v7x
topology: tpu7x:2x2x1
jax: 0.10.0
libtpu: 0.0.40
codegen_flags: <defaults>
</compile_context>

<pallas_src>
import math

import jax
import jax.numpy as jnp
from jax import lax
from jax.experimental import pallas as pl
from jax.experimental.pallas import tpu as pltpu

_INV_SQRT2 = 1.0 / math.sqrt(2.0)


def bridge_mlp_kernel(x_ref, w1_ref, b1_ref, w2_ref, b2_ref, o_ref, acc_ref):
    # x_ref : (tile_m, C)       row tile of activations (bf16), resident across h axis
    # w1_ref: (C, tile_h)       c_fc weight column tile (bf16)
    # b1_ref: (1, tile_h)       c_fc bias tile (f32)
    # w2_ref: (tile_h, C)       c_proj weight row tile (bf16)
    # b2_ref: (1, C)            c_proj bias (f32)
    # o_ref : (tile_m, C)       output row tile (written on last h step)
    # acc_ref: (tile_m, C) f32  c_proj accumulator across the H reduction axis
    hk = pl.program_id(1)

    @pl.when(hk == 0)
    def _():
        # Fold the c_proj bias into the accumulator init (saves a full-tile
        # epilogue add + copy).
        acc_ref[...] = jnp.broadcast_to(b2_ref[...].astype(jnp.float32),
                                        acc_ref.shape)

    # c_fc partial: (tile_m, C) @ (C, tile_h) on the MXU, f32 accumulate.
    h = jnp.dot(x_ref[...], w1_ref[...], preferred_element_type=jnp.float32)
    h = h + b1_ref[...].astype(jnp.float32)

    # Exact erf-based GELU (matches torch nn.GELU() default).
    h = 0.5 * h * (1.0 + lax.erf(h * _INV_SQRT2))

    # c_proj partial: accumulate (tile_m, tile_h) @ (tile_h, C) over the H axis.
    # NOTE: h is quantized to bf16 for the MXU (documented accuracy decision).
    acc_ref[...] += jnp.dot(h.astype(w2_ref.dtype), w2_ref[...],
                            preferred_element_type=jnp.float32)

    @pl.when(hk == pl.num_programs(1) - 1)
    def _():
        # TODO(synk): dropout is identity in eval mode; training-mode dropout
        # (pltpu.prng_random_bits mask + 1/(1-p) scale) not implemented here.
        o_ref[...] = acc_ref[...].astype(o_ref.dtype)


def _vmem_capacity_bytes():
    """Physical VMEM per TensorCore; conservative (v7x) fallback if unknown."""
    try:
        info = pltpu.get_tpu_info()
        cap = getattr(info, "vmem_capacity_bytes", None)
        if cap:
            return int(cap)
    except Exception:
        pass
    return 64 * 1024 * 1024


def _footprint_bytes(C, tile_h, tile_m, out_bytes):
    """Estimated VMEM footprint for one grid step (double-buffered I/O)."""
    fp = 2 * tile_m * C * 2            # x tile (bf16), double-buffered
    fp += 2 * C * tile_h * 2           # W1 tile (bf16), double-buffered
    fp += 2 * tile_h * C * 2           # W2 tile (bf16), double-buffered
    fp += 2 * 8 * tile_h * 4           # b1 tile (sublane-padded f32)
    fp += 2 * 8 * C * 4                # b2 (sublane-padded f32)
    fp += 2 * tile_m * C * out_bytes   # output tile, double-buffered
    fp += tile_m * C * 4               # f32 accumulator scratch
    fp += 3 * tile_m * tile_h * 4      # in-kernel hidden intermediate + temps
    return fp


def _pick_tile_h(H, C, tile_m, out_bytes, budget):
    """Prefer weights-resident (tile_h = H); else largest hidden tile that fits."""
    candidates = [H] + [t for t in (2048, 1024, 512, 256, 128)
                        if t < H and H % t == 0]
    for th in candidates:
        if _footprint_bytes(C, th, tile_m, out_bytes) <= budget:
            return th
    return candidates[-1]


def bridge_mlp(x, w1, b1, w2, b2, *, tile_m=512, tile_h=None,
               compute_dtype=jnp.bfloat16, out_dtype=None):
    """x: [B, T, C] -> [B, T, C].  Weights stored as (in, out)."""
    B, T, C = x.shape
    H = w1.shape[1]
    assert C % 128 == 0, "n_embd must be a multiple of 128 for lane-dense tiles"
    assert H % 128 == 0

    out_dtype = x.dtype if out_dtype is None else out_dtype
    out_bytes = jnp.dtype(out_dtype).itemsize
    M = B * T

    # Row tile: MXU-aligned, multiple of 8 sublanes, never larger than (padded) M.
    tile_m = max(8, min(tile_m, M))
    tile_m = (tile_m // 8) * 8
    n_m = pl.cdiv(M, tile_m)
    M_pad = n_m * tile_m

    capacity = _vmem_capacity_bytes()
    budget = int(0.8 * capacity)

    # Hidden tile: resident weights (tile_h = H) when they fit the VMEM budget,
    # otherwise the largest lane-dense divisor of H that fits.
    if tile_h is None or H % tile_h != 0 or tile_h % 128 != 0 or tile_h > H:
        tile_h = _pick_tile_h(H, C, tile_m, out_bytes, budget)
    n_h = H // tile_h

    vmem_limit = int(_footprint_bytes(C, tile_h, tile_m, out_bytes) * 1.25) + (4 << 20)
    vmem_limit = min(capacity, max(vmem_limit, 32 << 20))

    x2 = x.reshape(M, C).astype(compute_dtype)
    if M_pad != M:
        x2 = jnp.pad(x2, ((0, M_pad - M), (0, 0)))

    w1c = w1.astype(compute_dtype)
    w2c = w2.astype(compute_dtype)
    b1r = b1.reshape(1, H).astype(jnp.float32)
    b2r = b2.reshape(1, C).astype(jnp.float32)

    out2 = pl.pallas_call(
        bridge_mlp_kernel,
        out_shape=jax.ShapeDtypeStruct((M_pad, C), out_dtype),
        grid_spec=pltpu.PrefetchScalarGridSpec(
            num_scalar_prefetch=0,
            grid=(n_m, n_h),                                  # (parallel M, reduction H last)
            in_specs=[
                pl.BlockSpec((tile_m, C), lambda i, h: (i, 0)),   # x rows (resident over h)
                pl.BlockSpec((C, tile_h), lambda i, h: (0, h)),   # W1 column tile
                pl.BlockSpec((1, tile_h), lambda i, h: (0, h)),   # b1 tile
                pl.BlockSpec((tile_h, C), lambda i, h: (h, 0)),   # W2 row tile
                pl.BlockSpec((1, C), lambda i, h: (0, 0)),        # b2
            ],
            out_specs=pl.BlockSpec((tile_m, C), lambda i, h: (i, 0)),
            scratch_shapes=[pltpu.VMEM((tile_m, C), jnp.float32)],
        ),
        compiler_params=pltpu.CompilerParams(
            dimension_semantics=("parallel", "arbitrary"),
            vmem_limit_bytes=int(vmem_limit)),
    )(x2, w1c, b1r, w2c, b2r)

    return out2[:M].reshape(B, T, C)


def init_params(key, n_embd):
    """Deterministic init matching nn.Linear's U(-1/sqrt(fan_in), 1/sqrt(fan_in))."""
    h = 4 * n_embd
    k1, k2, k3, k4 = jax.random.split(key, 4)
    bound1 = 1.0 / math.sqrt(n_embd)
    bound2 = 1.0 / math.sqrt(h)
    # stored as (in, out) for the kernel
    w1 = jax.random.uniform(k1, (n_embd, h), jnp.float32, -bound1, bound1)
    b1 = jax.random.uniform(k2, (h,), jnp.float32, -bound1, bound1)
    w2 = jax.random.uniform(k3, (h, n_embd), jnp.float32, -bound2, bound2)
    b2 = jax.random.uniform(k4, (n_embd,), jnp.float32, -bound2, bound2)
    return w1, b1, w2, b2


def reference_bf16(x, w1, b1, w2, b2):
    """Pure-JAX reference with the same bf16-operand / f32-accumulate matmuls."""
    B, T, C = x.shape
    xb = x.reshape(B * T, C).astype(jnp.bfloat16)
    h = jnp.dot(xb, w1.astype(jnp.bfloat16),
                preferred_element_type=jnp.float32) + b1
    h = 0.5 * h * (1.0 + lax.erf(h * _INV_SQRT2))
    out = jnp.dot(h.astype(jnp.bfloat16), w2.astype(jnp.bfloat16),
                  preferred_element_type=jnp.float32) + b2
    return out.reshape(B, T, C).astype(x.dtype)


def reference_f32(x, w1, b1, w2, b2):
    h = jnp.dot(x, w1) + b1
    h = 0.5 * h * (1.0 + lax.erf(h * _INV_SQRT2))
    return jnp.dot(h, w2) + b2


def _check(out, x, w1, b1, w2, b2, tag):
    ref = reference_bf16(x, w1, b1, w2, b2)
    err = float(jnp.max(jnp.abs(out.astype(jnp.float32) - ref)))
    assert jnp.allclose(out.astype(jnp.float32), ref, atol=2e-2, rtol=2e-2), (
        f"[{tag}] mismatch vs bf16 reference (max err {err})")
    ref32 = reference_f32(x, w1, b1, w2, b2)
    err32 = float(jnp.max(jnp.abs(out.astype(jnp.float32) - ref32)))
    assert jnp.allclose(out.astype(jnp.float32), ref32, atol=1e-1, rtol=1e-1), (
        f"[{tag}] mismatch vs f32 reference (max err {err32})")


if __name__ == "__main__":
    # Small but lane-dense toy config: C = 128 (multiple of 128), hidden = 512.
    B, T, n_embd = 2, 16, 128
    key = jax.random.PRNGKey(0)
    kx, kp = jax.random.split(key)
    x = jax.random.normal(kx, (B, T, n_embd), jnp.float32)
    w1, b1, w2, b2 = init_params(kp, n_embd)

    # 1) Default auto-tiling: tile_m clamps to M=32, weights fit VMEM -> the
    #    weights-resident path (n_h == 1) is exercised.
    out_res = bridge_mlp(x, w1, b1, w2, b2)
    out_res = jax.block_until_ready(out_res)
    assert out_res.shape == (B, T, n_embd)
    _check(out_res, x, w1, b1, w2, b2, "resident")

    # 2) Explicit small tiles: exercises the multi-step parallel-M axis and the
    #    streamed H-reduction axis (n_m=2, n_h=4), as used for large n_embd.
    out_str = bridge_mlp(x, w1, b1, w2, b2, tile_m=16, tile_h=128)
    out_str = jax.block_until_ready(out_str)
    assert out_str.shape == (B, T, n_embd)
    _check(out_str, x, w1, b1, w2, b2, "streamed")

    print("KERNEL_OK")
</pallas_src>

<mosaic_0001>
module attributes {stable_mosaic.version = 11 : i64} {
  func.func @bridge_mlp_kernel(%arg0: i32, %arg1: i32, %arg2: memref<32x128xbf16, #tpu.memory_space<vmem>>, %arg3: memref<128x512xbf16, #tpu.memory_space<vmem>>, %arg4: memref<1x512xf32, #tpu.memory_space<vmem>>, %arg5: memref<512x128xbf16, #tpu.memory_space<vmem>>, %arg6: memref<1x128xf32, #tpu.memory_space<vmem>>, %arg7: memref<32x128xf32, #tpu.memory_space<vmem>>, %arg8: memref<32x128xf32, #tpu.memory_space<vmem>>) attributes {dimension_semantics = [#tpu.dimension_semantics<parallel>, #tpu.dimension_semantics<arbitrary>], iteration_bounds = array<i64: 1, 1>, scalar_prefetch = 0 : i64, scratch_operands = 1 : i64, tpu.core_type = #tpu.core_type<tc>, window_params = [{transform_indices = @transform_0, window_bounds = array<i64: 32, 128>}, {transform_indices = @transform_1, window_bounds = array<i64: 128, 512>}, {transform_indices = @transform_2, window_bounds = array<i64: 1, 512>}, {transform_indices = @transform_3, window_bounds = array<i64: 512, 128>}, {pipeline_mode = #tpu.pipeline_mode<synchronous>, transform_indices = @transform_4, window_bounds = array<i64: 1, 128>}, {transform_indices = @transform_5, window_bounds = array<i64: 32, 128>}]} {
    %c0_i32 = arith.constant 0 : i32
    %0 = arith.cmpi eq, %arg1, %c0_i32 : i32
    %1 = arith.extui %0 : i1 to i32
    %c0_i32_0 = arith.constant 0 : i32
    %2 = arith.cmpi ne, %1, %c0_i32_0 : i32
    scf.if %2 {
      %c0_18 = arith.constant 0 : index
      %c0_19 = arith.constant 0 : index
      %26 = vector.load %arg6[%c0_18, %c0_19] : memref<1x128xf32, #tpu.memory_space<vmem>>, vector<1x128xf32>
      %27 = vector.shape_cast %26 : vector<1x128xf32> to vector<1x128xf32>
      %28 = vector.broadcast %27 : vector<1x128xf32> to vector<32x128xf32>
      %c0_20 = arith.constant 0 : index
      %c0_21 = arith.constant 0 : index
      %29 = vector.load %arg8[%c0_20, %c0_21] : memref<32x128xf32, #tpu.memory_space<vmem>>, vector<32x128xf32>
      tpu.vector_store %arg8[%c0_20, %c0_21], %28 {strides = array<i32>} : memref<32x128xf32, #tpu.memory_space<vmem>>, vector<32x128xf32>,
    } else {
    }
    %c0 = arith.constant 0 : index
    %c0_1 = arith.constant 0 : index
    %3 = vector.load %arg2[%c0, %c0_1] : memref<32x128xbf16, #tpu.memory_space<vmem>>, vector<32x128xbf16>
    %c0_2 = arith.constant 0 : index
    %c0_3 = arith.constant 0 : index
    %4 = vector.load %arg3[%c0_2, %c0_3] : memref<128x512xbf16, #tpu.memory_space<vmem>>, vector<128x512xbf16>
    %cst = arith.constant dense<0.000000e+00> : vector<32x512xf32>
    %5 = tpu.matmul %3, %4, %cst {dimension_numbers = #tpu.dot_dimension_numbers<[1], [0], [0], [1], [0, 0, 1, 1], [], []>} : vector<32x128xbf16>, vector<128x512xbf16>, vector<32x512xf32> -> vector<32x512xf32>
    %c0_4 = arith.constant 0 : index
    %c0_5 = arith.constant 0 : index
    %6 = vector.load %arg4[%c0_4, %c0_5] : memref<1x512xf32, #tpu.memory_space<vmem>>, vector<1x512xf32>
    %7 = vector.broadcast %6 : vector<1x512xf32> to vector<32x512xf32>
    %8 = arith.addf %5, %7 : vector<32x512xf32>
    %cst_6 = arith.constant 5.000000e-01 : f32
    %9 = vector.broadcast %cst_6 : f32 to vector<32x512xf32>
    %10 = arith.mulf %9, %8 : vector<32x512xf32>
    %cst_7 = arith.constant 0.707106769 : f32
    %11 = vector.broadcast %cst_7 : f32 to vector<32x512xf32>
    %12 = arith.mulf %8, %11 : vector<32x512xf32>
    %13 = math.erf %12 : vector<32x512xf32>
    %cst_8 = arith.constant 1.000000e+00 : f32
    %14 = vector.broadcast %cst_8 : f32 to vector<32x512xf32>
    %15 = arith.addf %14, %13 : vector<32x512xf32>
    %16 = arith.mulf %10, %15 : vector<32x512xf32>
    %c0_9 = arith.constant 0 : index
    %c0_10 = arith.constant 0 : index
    %17 = vector.load %arg8[%c0_9, %c0_10] : memref<32x128xf32, #tpu.memory_space<vmem>>, vector<32x128xf32>
    %18 = arith.truncf %16 : vector<32x512xf32> to vector<32x512xbf16>
    %c0_11 = arith.constant 0 : index
    %c0_12 = arith.constant 0 : index
    %19 = vector.load %arg5[%c0_11, %c0_12] : memref<512x128xbf16, #tpu.memory_space<vmem>>, vector<512x128xbf16>
    %cst_13 = arith.constant dense<0.000000e+00> : vector<32x128xf32>
    %20 = tpu.matmul %18, %19, %cst_13 {dimension_numbers = #tpu.dot_dimension_numbers<[1], [0], [0], [1], [0, 0, 1, 1], [], []>} : vector<32x512xbf16>, vector<512x128xbf16>, vector<32x128xf32> -> vector<32x128xf32>
    %21 = arith.addf %17, %20 : vector<32x128xf32>
    %c0_14 = arith.constant 0 : index
    %c0_15 = arith.constant 0 : index
    %22 = vector.load %arg8[%c0_14, %c0_15] : memref<32x128xf32, #tpu.memory_space<vmem>>, vector<32x128xf32>
    tpu.vector_store %arg8[%c0_14, %c0_15], %21 {strides = array<i32>} : memref<32x128xf32, #tpu.memory_space<vmem>>, vector<32x128xf32>,
    %c0_i32_16 = arith.constant 0 : i32
    %23 = arith.cmpi eq, %arg1, %c0_i32_16 : i32
    %24 = arith.extui %23 : i1 to i32
    %c0_i32_17 = arith.constant 0 : i32
    %25 = arith.cmpi ne, %24, %c0_i32_17 : i32
    scf.if %25 {
      %c0_18 = arith.constant 0 : index
      %c0_19 = arith.constant 0 : index
      %26 = vector.load %arg8[%c0_18, %c0_19] : memref<32x128xf32, #tpu.memory_space<vmem>>, vector<32x128xf32>
      %c0_20 = arith.constant 0 : index
      %c0_21 = arith.constant 0 : index
      %27 = vector.load %arg7[%c0_20, %c0_21] : memref<32x128xf32, #tpu.memory_space<vmem>>, vector<32x128xf32>
      tpu.vector_store %arg7[%c0_20, %c0_21], %26 {strides = array<i32>} : memref<32x128xf32, #tpu.memory_space<vmem>>, vector<32x128xf32>,
    } else {
    }
    return
  }
  func.func @transform_0(%arg0: i32, %arg1: i32) -> (i32, i32) {
    %c0_i32 = arith.constant 0 : i32
    %c0_i32_0 = arith.constant 0 : i32
    return %arg0, %c0_i32 : i32, i32
  }
  func.func @transform_1(%arg0: i32, %arg1: i32) -> (i32, i32) {
    %c0_i32 = arith.constant 0 : i32
    %c0_i32_0 = arith.constant 0 : i32
    return %c0_i32, %arg1 : i32, i32
  }
  func.func @transform_2(%arg0: i32, %arg1: i32) -> (i32, i32) {
    %c0_i32 = arith.constant 0 : i32
    %c0_i32_0 = arith.constant 0 : i32
    return %c0_i32, %arg1 : i32, i32
  }
  func.func @transform_3(%arg0: i32, %arg1: i32) -> (i32, i32) {
    %c0_i32 = arith.constant 0 : i32
    %c0_i32_0 = arith.constant 0 : i32
    return %arg1, %c0_i32 : i32, i32
  }
  func.func @transform_4(%arg0: i32, %arg1: i32) -> (i32, i32) {
    %c0_i32 = arith.constant 0 : i32
    %c0_i32_0 = arith.constant 0 : i32
    %c0_i32_1 = arith.constant 0 : i32
    return %c0_i32, %c0_i32_0 : i32, i32
  }
  func.func @transform_5(%arg0: i32, %arg1: i32) -> (i32, i32) {
    %c0_i32 = arith.constant 0 : i32
    %c0_i32_0 = arith.constant 0 : i32
    return %arg0, %c0_i32 : i32, i32
  }
}

</mosaic_0001>

<llo_original>
// kernel: tpu_custom_call.1
$region0: #{tpu_custom_call.1}
  #allocation0 [shape = 'u32[]', space=smem, size = 0x4, offset = 0x4, fixed_abs, tag = 'smem constant byte address 0x4 - core index']
  #allocation1 [shape = 'u32[144,128]{1,0:T(1,128)}', space=vmem, size = 0x12000, scoped, tag = 'internal scratch']
  #allocation2 [shape = 'f32[32,128]{1,0:T(8,128)}', space=vmem, size = 0x4000, scoped, tag = 'scratch operand']
  %s0 = inlined_call_operand.hbm [shape: bf16[32,128], index: 0, kind: input, shape index: {}]
  %s1 = inlined_call_operand.hbm [shape: bf16[128,512], index: 1, kind: input, shape index: {}]
  %s2 = inlined_call_operand.vmem [shape: f32[1,512], index: 2, kind: input, shape index: {}]
  %s3 = inlined_call_operand.hbm [shape: bf16[512,128], index: 3, kind: input, shape index: {}]
  %s4 = inlined_call_operand.vmem [shape: f32[1,128], index: 4, kind: input, shape index: {}]
  %s5 = inlined_call_operand.hbm [shape: f32[32,128], index: 5, kind: output, shape index: {}]
  %s6 = sld [smem:[#allocation0]]
  $region50: #{tpu_custom_call.1} parent=0
    _
  %s8 = ssub.s32 1, %s6
  %s9 = scalar_select 0, %s8, %s6
  $region1: #{tpu_custom_call.1} parent=0
    #allocation3 [shape = 'u8[8192]{0}', space=vmem, size = 0x2000, scoped, tag = 'input window, operand 0, single buffered']
    #allocation4 [shape = 's32[1]{0}', space=sflag, size = 0x4, scoped, tag = 'scoped memory for tpu_custom_call.1']
    #allocation5 [shape = 's32[1]{0}', space=sflag, size = 0x4, scoped, tag = 'scoped memory for tpu_custom_call.1']
    #allocation6 [shape = 'u8[131072]{0}', space=vmem, size = 0x20000, scoped, tag = 'input window, operand 1, single buffered']
    #allocation7 [shape = 's32[1]{0}', space=sflag, size = 0x4, scoped, tag = 'scoped memory for tpu_custom_call.1']
    #allocation8 [shape = 'u8[131072]{0}', space=vmem, size = 0x20000, scoped, tag = 'input window, operand 3, single buffered']
    #allocation9 [shape = 'u8[16384]{0}', space=vmem, size = 0x4000, scoped, tag = 'output window, operand 0, single buffered']
    %10 = vsyncpa [#allocation4], 0
    %11 = vsyncpa [#allocation7], 0
    %12 = vsyncpa [#allocation5], 0
    // Predicated region
    $region2: #{tpu_custom_call.1} parent=1 // pred_check
      _
    $region3: #{tpu_custom_call.1} parent=1 // pred_check_branch
      %14 = sbr.rel (0) target = $region5
    $region4: #{tpu_custom_call.1} parent=1 // pred_region
      %s16 = ssub.s32 256, 256
      %17 = vsyncadd [#allocation4], %s16
      %s18 = sshll.u32 [#allocation3], 4
      %s19 = int_to_ptr.vmem [resolvable:$true] %s18
      %24 = dma.hbm_to_vmem [thread:$0]  %s0, 256, %s19, [#allocation4], 64, 64, 4
    $region5: #{tpu_custom_call.1} parent=1 // pred_fallthru
      _
    // Predicated region
    $region6: #{tpu_custom_call.1} parent=1 // pred_check
      _
    $region7: #{tpu_custom_call.1} parent=1 // pred_check_branch
      %26 = sbr.rel (0) target = $region9
    $region8: #{tpu_custom_call.1} parent=1 // pred_region
      %s28 = ssub.s32 4096, 4096
      %29 = vsyncadd [#allocation7], %s28
      %s30 = sshll.u32 [#allocation6], 4
      %s31 = int_to_ptr.vmem [resolvable:$true] %s30
      %36 = dma.hbm_to_vmem [thread:$0]  %s1, 4096, %s31, [#allocation7], 256, 256, 16
    $region9: #{tpu_custom_call.1} parent=1 // pred_fallthru
      _
    // Predicated region
    $region10: #{tpu_custom_call.1} parent=1 // pred_check
      _
    $region11: #{tpu_custom_call.1} parent=1 // pred_check_branch
      %38 = sbr.rel (0) target = $region13
    $region12: #{tpu_custom_call.1} parent=1 // pred_region
      _
    $region13: #{tpu_custom_call.1} parent=1 // pred_fallthru
      _
    // Predicated region
    $region14: #{tpu_custom_call.1} parent=1 // pred_check
      _
    $region15: #{tpu_custom_call.1} parent=1 // pred_check_branch
      %40 = sbr.rel (0) target = $region17
    $region16: #{tpu_custom_call.1} parent=1 // pred_region
      %s42 = ssub.s32 4096, 4096
      %43 = vsyncadd [#allocation7], %s42
      %s44 = sshll.u32 [#allocation8], 4
      %s45 = int_to_ptr.vmem [resolvable:$true] %s44
      %50 = dma.hbm_to_vmem [thread:$0]  %s3, 4096, %s45, [#allocation7], 64, 64, 4
    $region17: #{tpu_custom_call.1} parent=1 // pred_fallthru
      _
    // Predicated region
    $region18: #{tpu_custom_call.1} parent=1 // pred_check
      _
    $region19: #{tpu_custom_call.1} parent=1 // pred_check_branch
      %52 = sbr.rel (0) target = $region21
    $region20: #{tpu_custom_call.1} parent=1 // pred_region
      _
    $region21: #{tpu_custom_call.1} parent=1 // pred_fallthru
      _
    // Predicated region
    $region22: #{tpu_custom_call.1} parent=1 // pred_check
      _
    $region23: #{tpu_custom_call.1} parent=1 // pred_check_branch
      %54 = sbr.rel (0) target = $region25
    $region24: #{tpu_custom_call.1} parent=1 // pred_region
      %55 = dma.done [#allocation4], 256
    $region25: #{tpu_custom_call.1} parent=1 // pred_fallthru
      _
    // Predicated region
    $region26: #{tpu_custom_call.1} parent=1 // pred_check
      _
    $region27: #{tpu_custom_call.1} parent=1 // pred_check_branch
      %57 = sbr.rel (0) target = $region29
    $region28: #{tpu_custom_call.1} parent=1 // pred_region
      %58 = dma.done [#allocation7], 4096
    $region29: #{tpu_custom_call.1} parent=1 // pred_fallthru
      _
    // Predicated region
    $region30: #{tpu_custom_call.1} parent=1 // pred_check
      _
    $region31: #{tpu_custom_call.1} parent=1 // pred_check_branch
      %60 = sbr.rel (0) target = $region33
    $region32: #{tpu_custom_call.1} parent=1 // pred_region
      %61 = dma.done [#allocation7], 4096
    $region33: #{tpu_custom_call.1} parent=1 // pred_fallthru
      _
    %p63 = scmp.eq.s32.totalorder 0, 0
    // Predicated region
    $region34: #{tpu_custom_call.1} parent=1 // pred_check
      %p64 = pneg %p63
    $region35: #{tpu_custom_call.1} parent=1 // pred_check_branch
      %66 = sbr.rel (%p64) target = $region37
    $region36: #{tpu_custom_call.1} parent=1 // pred_region
      %v67 = vld [vmem:[%s4] sm:$0x1]
      %v69 = vlaneseq
      %v70 = vshrl.u32 %v69, 7
      %v71 = vsub.s32 0, %v70
      %v72 = vrot.slane %v67, %v71
      %74 = vst [vmem:[#allocation2] sm:$0xff] %v72
      %75 = vst [vmem:[#allocation2 + $0x8] sm:$0xff] %v72
      %76 = vst [vmem:[#allocation2 + $0x10] sm:$0xff] %v72
      %77 = vst [vmem:[#allocation2 + $0x18] sm:$0xff] %v72
    $region37: #{tpu_custom_call.1} parent=1 // pred_fallthru
      _
    %v78 = vld [vmem:[#allocation3] sm:$0xf]
    %v79 = vld [vmem:[#allocation3 + $0x4] sm:$0xf]
    %v80 = vld [vmem:[#allocation3 + $0x8] sm:$0xf]
    %v81 = vld [vmem:[#allocation3 + $0xc] sm:$0xf]
    %v82 = vld [vmem:[#allocation6] sm:$0xff]
    %v83 = vld [vmem:[#allocation6 + $0x8] sm:$0xff]
    %v84 = vld [vmem:[#allocation6 + $0x10] sm:$0xff]
    %v85 = vld [vmem:[#allocation6 + $0x18] sm:$0xff]
    %v86 = vld [vmem:[#allocation6 + $0x20] sm:$0xff]
    %v87 = vld [vmem:[#allocation6 + $0x28] sm:$0xff]
    %v88 = vld [vmem:[#allocation6 + $0x30] sm:$0xff]
    %v89 = vld [vmem:[#allocation6 + $0x38] sm:$0xff]
    %v90 = vld [vmem:[#allocation6 + $0x40] sm:$0xff]
    %v91 = vld [vmem:[#allocation6 + $0x48] sm:$0xff]
    %v92 = vld [vmem:[#allocation6 + $0x50] sm:$0xff]
    %v93 = vld [vmem:[#allocation6 + $0x58] sm:$0xff]
    %v94 = vld [vmem:[#allocation6 + $0x60] sm:$0xff]
    %v95 = vld [vmem:[#allocation6 + $0x68] sm:$0xff]
    %v96 = vld [vmem:[#allocation6 + $0x70] sm:$0xff]
    %v97 = vld [vmem:[#allocation6 + $0x78] sm:$0xff]
    %v98 = vld [vmem:[#allocation6 + $0x80] sm:$0xff]
    %v99 = vld [vmem:[#allocation6 + $0x88] sm:$0xff]
    %v100 = vld [vmem:[#allocation6 + $0x90] sm:$0xff]
    %v101 = vld [vmem:[#allocation6 + $0x98] sm:$0xff]
    %v102 = vld [vmem:[#allocation6 + $0xa0] sm:$0xff]
    %v103 = vld [vmem:[#allocation6 + $0xa8] sm:$0xff]
    %v104 = vld [vmem:[#allocation6 + $0xb0] sm:$0xff]
    %v105 = vld [vmem:[#allocation6 + $0xb8] sm:$0xff]
    %v106 = vld [vmem:[#allocation6 + $0xc0] sm:$0xff]
    %v107 = vld [vmem:[#allocation6 + $0xc8] sm:$0xff]
    %v108 = vld [vmem:[#allocation6 + $0xd0] sm:$0xff]
    %v109 = vld [vmem:[#allocation6 + $0xd8] sm:$0xff]
    %v110 = vld [vmem:[#allocation6 + $0xe0] sm:$0xff]
    %v111 = vld [vmem:[#allocation6 + $0xe8] sm:$0xff]
    %v112 = vld [vmem:[#allocation6 + $0xf0] sm:$0xff]
    %v113 = vld [vmem:[#allocation6 + $0xf8] sm:$0xff]
    %v114 = vld [vmem:[%s2] sm:$0xf]
    %v116 = vlaneseq
    %v117 = vshrl.u32 %v116, 7
    %v118 = vsub.s32 0, %v117
    %v119 = vrot.slane %v114, %v118
    %v120 = vlaneseq
    %v121 = vshrl.u32 %v120, 7
    %v122 = vsub.s32 1, %v121
    %v123 = vrot.slane %v114, %v122
    %v124 = vlaneseq
    %v125 = vshrl.u32 %v124, 7
    %v126 = vsub.s32 2, %v125
    %v127 = vrot.slane %v114, %v126
    %v128 = vlaneseq
    %v129 = vshrl.u32 %v128, 7
    %v130 = vsub.s32 3, %v129
    %v131 = vrot.slane %v114, %v130
    %v140 = vunpack.c.l.b16 %v78
    %v141 = vunpack.c.l.b16 %v79
    %v142 = vunpack.c.l.b16 %v80
    %v143 = vunpack.c.l.b16 %v81
    %v144 = vpack.c.b16 %v141, %v140
    %v145 = vpack.c.b16 %v143, %v142
    %v180 = vunpack.c.l.b16 %v82
    %v181 = vunpack.c.h.b16 %v82
    %v182 = vunpack.c.l.b16 %v83
    %v183 = vunpack.c.h.b16 %v83
    %v184 = vunpack.c.l.b16 %v84
    %v185 = vunpack.c.h.b16 %v84
    %v186 = vunpack.c.l.b16 %v85
    %v187 = vunpack.c.h.b16 %v85
    %v188 = vunpack.c.l.b16 %v86
    %v189 = vunpack.c.h.b16 %v86
    %v190 = vunpack.c.l.b16 %v87
    %v191 = vunpack.c.h.b16 %v87
    %v192 = vunpack.c.l.b16 %v88
    %v193 = vunpack.c.h.b16 %v88
    %v194 = vunpack.c.l.b16 %v89
    %v195 = vunpack.c.h.b16 %v89
    %v196 = vunpack.c.l.b16 %v90
    %v197 = vunpack.c.h.b16 %v90
    %v198 = vunpack.c.l.b16 %v91
    %v199 = vunpack.c.h.b16 %v91
    %v200 = vunpack.c.l.b16 %v92
    %v201 = vunpack.c.h.b16 %v92
    %v202 = vunpack.c.l.b16 %v93
    %v203 = vunpack.c.h.b16 %v93
    %v204 = vunpack.c.l.b16 %v94
    %v205 = vunpack.c.h.b16 %v94
    %v206 = vunpack.c.l.b16 %v95
    %v207 = vunpack.c.h.b16 %v95
    %v208 = vunpack.c.l.b16 %v96
    %v209 = vunpack.c.h.b16 %v96
    %v210 = vunpack.c.l.b16 %v97
    %v211 = vunpack.c.h.b16 %v97
    %v212 = vunpack.c.l.b16 %v98
    %v213 = vunpack.c.h.b16 %v98
    %v214 = vunpack.c.l.b16 %v99
    %v215 = vunpack.c.h.b16 %v99
    %v216 = vunpack.c.l.b16 %v100
    %v217 = vunpack.c.h.b16 %v100
    %v218 = vunpack.c.l.b16 %v101
    %v219 = vunpack.c.h.b16 %v101
    %v220 = vunpack.c.l.b16 %v102
    %v221 = vunpack.c.h.b16 %v102
    %v222 = vunpack.c.l.b16 %v103
    %v223 = vunpack.c.h.b16 %v103
    %v224 = vunpack.c.l.b16 %v104
    %v225 = vunpack.c.h.b16 %v104
    %v226 = vunpack.c.l.b16 %v105
    %v227 = vunpack.c.h.b16 %v105
    %v228 = vunpack.c.l.b16 %v106
    %v229 = vunpack.c.h.b16 %v106
    %v230 = vunpack.c.l.b16 %v107
    %v231 = vunpack.c.h.b16 %v107
    %v232 = vunpack.c.l.b16 %v108
    %v233 = vunpack.c.h.b16 %v108
    %v234 = vunpack.c.l.b16 %v109
    %v235 = vunpack.c.h.b16 %v109
    %v236 = vunpack.c.l.b16 %v110
    %v237 = vunpack.c.h.b16 %v110
    %v238 = vunpack.c.l.b16 %v111
    %v239 = vunpack.c.h.b16 %v111
    %v240 = vunpack.c.l.b16 %v112
    %v241 = vunpack.c.h.b16 %v112
    %v242 = vunpack.c.l.b16 %v113
    %v243 = vunpack.c.h.b16 %v113
    %v244 = vpack.c.b16 %v184, %v180
    %v245 = vpack.c.b16 %v185, %v181
    %v246 = vpack.c.b16 %v186, %v182
    %v247 = vpack.c.b16 %v187, %v183
    %v248 = vpack.c.b16 %v192, %v188
    %v249 = vpack.c.b16 %v193, %v189
    %v250 = vpack.c.b16 %v194, %v190
    %v251 = vpack.c.b16 %v195, %v191
    %v252 = vpack.c.b16 %v200, %v196
    %v253 = vpack.c.b16 %v201, %v197
    %v254 = vpack.c.b16 %v202, %v198
    %v255 = vpack.c.b16 %v203, %v199
    %v256 = vpack.c.b16 %v208, %v204
    %v257 = vpack.c.b16 %v209, %v205
    %v258 = vpack.c.b16 %v210, %v206
    %v259 = vpack.c.b16 %v211, %v207
    %v260 = vpack.c.b16 %v216, %v212
    %v261 = vpack.c.b16 %v217, %v213
    %v262 = vpack.c.b16 %v218, %v214
    %v263 = vpack.c.b16 %v219, %v215
    %v264 = vpack.c.b16 %v224, %v220
    %v265 = vpack.c.b16 %v225, %v221
    %v266 = vpack.c.b16 %v226, %v222
    %v267 = vpack.c.b16 %v227, %v223
    %v268 = vpack.c.b16 %v232, %v228
    %v269 = vpack.c.b16 %v233, %v229
    %v270 = vpack.c.b16 %v234, %v230
    %v271 = vpack.c.b16 %v235, %v231
    %v272 = vpack.c.b16 %v240, %v236
    %v273 = vpack.c.b16 %v241, %v237
    %v274 = vpack.c.b16 %v242, %v238
    %v275 = vpack.c.b16 %v243, %v239
    %308 = vmatprep.subr.bf16.mxu0 %v245
    %309 = vmatpush1.bf16.msra.mxu0 %v244
    %310 = vmatprep.subr.bf16.mxu0 %v249
    %311 = vmatpush1.bf16.msra.mxu0 %v248
    %312 = vmatprep.subr.bf16.mxu0 %v253
    %313 = vmatpush1.bf16.msra.mxu0 %v252
    %314 = vmatprep.subr.bf16.mxu0 %v257
    %315 = vmatpush1.bf16.msra.mxu0 %v256
    %316 = vmatprep.subr.bf16.mxu0 %v261
    %317 = vmatpush1.bf16.msra.mxu0 %v260
    %318 = vmatprep.subr.bf16.mxu0 %v265
    %319 = vmatpush1.bf16.msra.mxu0 %v264
    %320 = vmatprep.subr.bf16.mxu0 %v269
    %321 = vmatpush1.bf16.msra.mxu0 %v268
    %322 = vmatprep.subr.bf16.mxu0 %v273
    %323 = vmatpush1.bf16.msra.mxu0 %v272
    %324 = vmatprep.subr.bf16.mxu0 0
    %325 = vmatpush1.bf16.msra.mxu0 0
    %326 = vmatprep.subr.bf16.mxu0 0
    %327 = vmatpush1.bf16.msra.mxu0 0
    %328 = vmatprep.subr.bf16.mxu0 0
    %329 = vmatpush1.bf16.msra.mxu0 0
    %330 = vmatprep.subr.bf16.mxu0 0
    %331 = vmatpush1.bf16.msra.mxu0 0
    %332 = vmatprep.subr.bf16.mxu0 0
    %333 = vmatpush1.bf16.msra.mxu0 0
    %334 = vmatprep.subr.bf16.mxu0 0
    %335 = vmatpush1.bf16.msra.mxu0 0
    %336 = vmatprep.subr.bf16.mxu0 0
    %337 = vmatpush1.bf16.msra.mxu0 0
    %338 = vmatprep.subr.bf16.mxu0 0
    %339 = vmatpush1.bf16.msra.mxu0 0
    %340 = vmatprep.mubr.bf16.mxu0 0
    %341 = vmatmul.mubr.bf16.gmra.mrb[0].mxu0 %v144
    %v342 = vpop.f32.mrb[0].mxu0
    %v343 = vadd.f32 %v119, %v342
    %v344 = vpop.f32.mrb[0].mxu0
    %v345 = vadd.f32 %v123, %v344
    %v346 = vpop.f32.mrb[0].mxu0
    %v347 = vadd.f32 %v119, %v346
    %v348 = vpop.f32.mrb[0].mxu0
    %v349 = vadd.f32 %v123, %v348
    %350 = vmatprep.mubr.bf16.mxu0 0
    %351 = vmatmul.mubr.bf16.gmra.mrb[0].mxu0 %v145
    %v352 = vpop.f32.mrb[0].mxu0
    %v353 = vadd.f32 %v119, %v352
    %v354 = vpop.f32.mrb[0].mxu0
    %v355 = vadd.f32 %v123, %v354
    %v356 = vpop.f32.mrb[0].mxu0
    %v357 = vadd.f32 %v119, %v356
    %v358 = vpop.f32.mrb[0].mxu0
    %v359 = vadd.f32 %v123, %v358
    %360 = vdwg.mxu0
    %361 = vmatprep.subr.bf16.mxu0 %v247
    %362 = vmatpush1.bf16.msra.mxu0 %v246
    %363 = vmatprep.subr.bf16.mxu0 %v251
    %364 = vmatpush1.bf16.msra.mxu0 %v250
    %365 = vmatprep.subr.bf16.mxu0 %v255
    %366 = vmatpush1.bf16.msra.mxu0 %v254
    %367 = vmatprep.subr.bf16.mxu0 %v259
    %368 = vmatpush1.bf16.msra.mxu0 %v258
    %369 = vmatprep.subr.bf16.mxu0 %v263
    %370 = vmatpush1.bf16.msra.mxu0 %v262
    %371 = vmatprep.subr.bf16.mxu0 %v267
    %372 = vmatpush1.bf16.msra.mxu0 %v266
    %373 = vmatprep.subr.bf16.mxu0 %v271
    %374 = vmatpush1.bf16.msra.mxu0 %v270
    %375 = vmatprep.subr.bf16.mxu0 %v275
    %376 = vmatpush1.bf16.msra.mxu0 %v274
    %377 = vmatprep.subr.bf16.mxu0 0
    %378 = vmatpush1.bf16.msra.mxu0 0
    %379 = vmatprep.subr.bf16.mxu0 0
    %380 = vmatpush1.bf16.msra.mxu0 0
    %381 = vmatprep.subr.bf16.mxu0 0
    %382 = vmatpush1.bf16.msra.mxu0 0
    %383 = vmatprep.subr.bf16.mxu0 0
    %384 = vmatpush1.bf16.msra.mxu0 0
    %385 = vmatprep.subr.bf16.mxu0 0
    %386 = vmatpush1.bf16.msra.mxu0 0
    %387 = vmatprep.subr.bf16.mxu0 0
    %388 = vmatpush1.bf16.msra.mxu0 0
    %389 = vmatprep.subr.bf16.mxu0 0
    %390 = vmatpush1.bf16.msra.mxu0 0
    %391 = vmatprep.subr.bf16.mxu0 0
    %392 = vmatpush1.bf16.msra.mxu0 0
    %393 = vmatprep.mubr.bf16.mxu0 0
    %394 = vmatmul.mubr.bf16.gmra.mrb[0].mxu0 %v144
    %v395 = vpop.f32.mrb[0].mxu0
    %v396 = vadd.f32 %v127, %v395
    %v397 = vpop.f32.mrb[0].mxu0
    %v398 = vadd.f32 %v131, %v397
    %v399 = vpop.f32.mrb[0].mxu0
    %v400 = vadd.f32 %v127, %v399
    %v401 = vpop.f32.mrb[0].mxu0
    %v402 = vadd.f32 %v131, %v401
    %403 = vmatprep.mubr.bf16.mxu0 0
    %404 = vmatmul.mubr.bf16.gmra.mrb[0].mxu0 %v145
    %v405 = vpop.f32.mrb[0].mxu0
    %v406 = vadd.f32 %v127, %v405
    %v407 = vpop.f32.mrb[0].mxu0
    %v408 = vadd.f32 %v131, %v407
    %v409 = vpop.f32.mrb[0].mxu0
    %v410 = vadd.f32 %v127, %v409
    %v411 = vpop.f32.mrb[0].mxu0
    %v412 = vadd.f32 %v131, %v411
    %413 = vdwg.mxu0
    %v414 = vmul.f32 %v343, 0.5
    %v415 = vmul.f32 %v345, 0.5
    %v416 = vmul.f32 %v396, 0.5
    %v417 = vmul.f32 %v398, 0.5
    %v418 = vmul.f32 %v347, 0.5
    %v419 = vmul.f32 %v349, 0.5
    %v420 = vmul.f32 %v400, 0.5
    %v421 = vmul.f32 %v402, 0.5
    %v422 = vmul.f32 %v353, 0.5
    %v423 = vmul.f32 %v355, 0.5
    %v424 = vmul.f32 %v406, 0.5
    %v425 = vmul.f32 %v408, 0.5
    %v426 = vmul.f32 %v357, 0.5
    %v427 = vmul.f32 %v359, 0.5
    %v428 = vmul.f32 %v410, 0.5
    %v429 = vmul.f32 %v412, 0.5
    %v430 = vmul.f32 %v343, 0.70710677
    %v431 = vmul.f32 %v345, 0.70710677
    %v432 = vmul.f32 %v396, 0.70710677
    %v433 = vmul.f32 %v398, 0.70710677
    %v434 = vmul.f32 %v347, 0.70710677
    %v435 = vmul.f32 %v349, 0.70710677
    %v436 = vmul.f32 %v400, 0.70710677
    %v437 = vmul.f32 %v402, 0.70710677
    %v438 = vmul.f32 %v353, 0.70710677
    %v439 = vmul.f32 %v355, 0.70710677
    %v440 = vmul.f32 %v406, 0.70710677
    %v441 = vmul.f32 %v408, 0.70710677
    %v442 = vmul.f32 %v357, 0.70710677
    %v443 = vmul.f32 %v359, 0.70710677
    %v444 = vmul.f32 %v410, 0.70710677
    %v445 = vmul.f32 %v412, 0.70710677
    %v446 = verf.f32.pop %v430
    %v447 = verf.f32.pop %v431
    %v448 = verf.f32.pop %v432
    %v449 = verf.f32.pop %v433
    %v450 = verf.f32.pop %v434
    %v451 = verf.f32.pop %v435
    %v452 = verf.f32.pop %v436
    %v453 = verf.f32.pop %v437
    %v454 = verf.f32.pop %v438
    %v455 = verf.f32.pop %v439
    %v456 = verf.f32.pop %v440
    %v457 = verf.f32.pop %v441
    %v458 = verf.f32.pop %v442
    %v459 = verf.f32.pop %v443
    %v460 = verf.f32.pop %v444
    %v461 = verf.f32.pop %v445
    %v462 = vadd.f32 %v446, 1.0
    %v463 = vadd.f32 %v447, 1.0
    %v464 = vadd.f32 %v448, 1.0
    %v465 = vadd.f32 %v449, 1.0
    %v466 = vadd.f32 %v450, 1.0
    %v467 = vadd.f32 %v451, 1.0
    %v468 = vadd.f32 %v452, 1.0
    %v469 = vadd.f32 %v453, 1.0
    %v470 = vadd.f32 %v454, 1.0
    %v471 = vadd.f32 %v455, 1.0
    %v472 = vadd.f32 %v456, 1.0
    %v473 = vadd.f32 %v457, 1.0
    %v474 = vadd.f32 %v458, 1.0
    %v475 = vadd.f32 %v459, 1.0
    %v476 = vadd.f32 %v460, 1.0
    %v477 = vadd.f32 %v461, 1.0
    %v478 = vmul.f32 %v414, %v462
    %v479 = vmul.f32 %v415, %v463
    %v480 = vmul.f32 %v416, %v464
    %v481 = vmul.f32 %v417, %v465
    %v482 = vmul.f32 %v418, %v466
    %v483 = vmul.f32 %v419, %v467
    %v484 = vmul.f32 %v420, %v468
    %v485 = vmul.f32 %v421, %v469
    %v486 = vmul.f32 %v422, %v470
    %v487 = vmul.f32 %v423, %v471
    %v488 = vmul.f32 %v424, %v472
    %v489 = vmul.f32 %v425, %v473
    %v490 = vmul.f32 %v426, %v474
    %v491 = vmul.f32 %v427, %v475
    %v492 = vmul.f32 %v428, %v476
    %v493 = vmul.f32 %v429, %v477
    %v494 = vld [vmem:[#allocation2] sm:$0xff]
    %v495 = vld [vmem:[#allocation2 + $0x8] sm:$0xff]
    %v496 = vld [vmem:[#allocation2 + $0x10] sm:$0xff]
    %v497 = vld [vmem:[#allocation2 + $0x18] sm:$0xff]
    %v498 = vpack.c.bf16 %v482, %v478
    %v499 = vpack.c.bf16 %v483, %v479
    %v500 = vpack.c.bf16 %v484, %v480
    %v501 = vpack.c.bf16 %v485, %v481
    %v502 = vpack.c.bf16 %v490, %v486
    %v503 = vpack.c.bf16 %v491, %v487
    %v504 = vpack.c.bf16 %v492, %v488
    %v505 = vpack.c.bf16 %v493, %v489
    %v506 = vld [vmem:[#allocation8] sm:$0xf]
    %v507 = vld [vmem:[#allocation8 + $0x4] sm:$0xf]
    %v508 = vld [vmem:[#allocation8 + $0x8] sm:$0xf]
    %v509 = vld [vmem:[#allocation8 + $0xc] sm:$0xf]
    %v510 = vld [vmem:[#allocation8 + $0x10] sm:$0xf]
    %v511 = vld [vmem:[#allocation8 + $0x14] sm:$0xf]
    %v512 = vld [vmem:[#allocation8 + $0x18] sm:$0xf]
    %v513 = vld [vmem:[#allocation8 + $0x1c] sm:$0xf]
    %v514 = vld [vmem:[#allocation8 + $0x20] sm:$0xf]
    %v515 = vld [vmem:[#allocation8 + $0x24] sm:$0xf]
    %v516 = vld [vmem:[#allocation8 + $0x28] sm:$0xf]
    %v517 = vld [vmem:[#allocation8 + $0x2c] sm:$0xf]
    %v518 = vld [vmem:[#allocation8 + $0x30] sm:$0xf]
    %v519 = vld [vmem:[#allocation8 + $0x34] sm:$0xf]
    %v520 = vld [vmem:[#allocation8 + $0x38] sm:$0xf]
    %v521 = vld [vmem:[#allocation8 + $0x3c] sm:$0xf]
    %v522 = vld [vmem:[#allocation8 + $0x40] sm:$0xf]
    %v523 = vld [vmem:[#allocation8 + $0x44] sm:$0xf]
    %v524 = vld [vmem:[#allocation8 + $0x48] sm:$0xf]
    %v525 = vld [vmem:[#allocation8 + $0x4c] sm:$0xf]
    %v526 = vld [vmem:[#allocation8 + $0x50] sm:$0xf]
    %v527 = vld [vmem:[#allocation8 + $0x54] sm:$0xf]
    %v528 = vld [vmem:[#allocation8 + $0x58] sm:$0xf]
    %v529 = vld [vmem:[#allocation8 + $0x5c] sm:$0xf]
    %v530 = vld [vmem:[#allocation8 + $0x60] sm:$0xf]
    %v531 = vld [vmem:[#allocation8 + $0x64] sm:$0xf]
    %v532 = vld [vmem:[#allocation8 + $0x68] sm:$0xf]
    %v533 = vld [vmem:[#allocation8 + $0x6c] sm:$0xf]
    %v534 = vld [vmem:[#allocation8 + $0x70] sm:$0xf]
    %v535 = vld [vmem:[#allocation8 + $0x74] sm:$0xf]
    %v536 = vld [vmem:[#allocation8 + $0x78] sm:$0xf]
    %v537 = vld [vmem:[#allocation8 + $0x7c] sm:$0xf]
    %v538 = vld [vmem:[#allocation8 + $0x80] sm:$0xf]
    %v539 = vld [vmem:[#allocation8 + $0x84] sm:$0xf]
    %v540 = vld [vmem:[#allocation8 + $0x88] sm:$0xf]
    %v541 = vld [vmem:[#allocation8 + $0x8c] sm:$0xf]
    %v542 = vld [vmem:[#allocation8 + $0x90] sm:$0xf]
    %v543 = vld [vmem:[#allocation8 + $0x94] sm:$0xf]
    %v544 = vld [vmem:[#allocation8 + $0x98] sm:$0xf]
    %v545 = vld [vmem:[#allocation8 + $0x9c] sm:$0xf]
    %v546 = vld [vmem:[#allocation8 + $0xa0] sm:$0xf]
    %v547 = vld [vmem:[#allocation8 + $0xa4] sm:$0xf]
    %v548 = vld [vmem:[#allocation8 + $0xa8] sm:$0xf]
    %v549 = vld [vmem:[#allocation8 + $0xac] sm:$0xf]
    %v550 = vld [vmem:[#allocation8 + $0xb0] sm:$0xf]
    %v551 = vld [vmem:[#allocation8 + $0xb4] sm:$0xf]
    %v552 = vld [vmem:[#allocation8 + $0xb8] sm:$0xf]
    %v553 = vld [vmem:[#allocation8 + $0xbc] sm:$0xf]
    %v554 = vld [vmem:[#allocation8 + $0xc0] sm:$0xf]
    %v555 = vld [vmem:[#allocation8 + $0xc4] sm:$0xf]
    %v556 = vld [vmem:[#allocation8 + $0xc8] sm:$0xf]
    %v557 = vld [vmem:[#allocation8 + $0xcc] sm:$0xf]
    %v558 = vld [vmem:[#allocation8 + $0xd0] sm:$0xf]
    %v559 = vld [vmem:[#allocation8 + $0xd4] sm:$0xf]
    %v560 = vld [vmem:[#allocation8 + $0xd8] sm:$0xf]
    %v561 = vld [vmem:[#allocation8 + $0xdc] sm:$0xf]
    %v562 = vld [vmem:[#allocation8 + $0xe0] sm:$0xf]
    %v563 = vld [vmem:[#allocation8 + $0xe4] sm:$0xf]
    %v564 = vld [vmem:[#allocation8 + $0xe8] sm:$0xf]
    %v565 = vld [vmem:[#allocation8 + $0xec] sm:$0xf]
    %v566 = vld [vmem:[#allocation8 + $0xf0] sm:$0xf]
    %v567 = vld [vmem:[#allocation8 + $0xf4] sm:$0xf]
    %v568 = vld [vmem:[#allocation8 + $0xf8] sm:$0xf]
    %v569 = vld [vmem:[#allocation8 + $0xfc] sm:$0xf]
    %v634 = vunpack.c.l.b16 %v506
    %v635 = vunpack.c.l.b16 %v507
    %v636 = vunpack.c.l.b16 %v508
    %v637 = vunpack.c.l.b16 %v509
    %v638 = vunpack.c.l.b16 %v510
    %v639 = vunpack.c.l.b16 %v511
    %v640 = vunpack.c.l.b16 %v512
    %v641 = vunpack.c.l.b16 %v513
    %v642 = vunpack.c.l.b16 %v514
    %v643 = vunpack.c.l.b16 %v515
    %v644 = vunpack.c.l.b16 %v516
    %v645 = vunpack.c.l.b16 %v517
    %v646 = vunpack.c.l.b16 %v518
    %v647 = vunpack.c.l.b16 %v519
    %v648 = vunpack.c.l.b16 %v520
    %v649 = vunpack.c.l.b16 %v521
    %v650 = vunpack.c.l.b16 %v522
    %v651 = vunpack.c.l.b16 %v523
    %v652 = vunpack.c.l.b16 %v524
    %v653 = vunpack.c.l.b16 %v525
    %v654 = vunpack.c.l.b16 %v526
    %v655 = vunpack.c.l.b16 %v527
    %v656 = vunpack.c.l.b16 %v528
    %v657 = vunpack.c.l.b16 %v529
    %v658 = vunpack.c.l.b16 %v530
    %v659 = vunpack.c.l.b16 %v531
    %v660 = vunpack.c.l.b16 %v532
    %v661 = vunpack.c.l.b16 %v533
    %v662 = vunpack.c.l.b16 %v534
    %v663 = vunpack.c.l.b16 %v535
    %v664 = vunpack.c.l.b16 %v536
    %v665 = vunpack.c.l.b16 %v537
    %v666 = vunpack.c.l.b16 %v538
    %v667 = vunpack.c.l.b16 %v539
    %v668 = vunpack.c.l.b16 %v540
    %v669 = vunpack.c.l.b16 %v541
    %v670 = vunpack.c.l.b16 %v542
    %v671 = vunpack.c.l.b16 %v543
    %v672 = vunpack.c.l.b16 %v544
    %v673 = vunpack.c.l.b16 %v545
    %v674 = vunpack.c.l.b16 %v546
    %v675 = vunpack.c.l.b16 %v547
    %v676 = vunpack.c.l.b16 %v548
    %v677 = vunpack.c.l.b16 %v549
    %v678 = vunpack.c.l.b16 %v550
    %v679 = vunpack.c.l.b16 %v551
    %v680 = vunpack.c.l.b16 %v552
    %v681 = vunpack.c.l.b16 %v553
    %v682 = vunpack.c.l.b16 %v554
    %v683 = vunpack.c.l.b16 %v555
    %v684 = vunpack.c.l.b16 %v556
    %v685 = vunpack.c.l.b16 %v557
    %v686 = vunpack.c.l.b16 %v558
    %v687 = vunpack.c.l.b16 %v559
    %v688 = vunpack.c.l.b16 %v560
    %v689 = vunpack.c.l.b16 %v561
    %v690 = vunpack.c.l.b16 %v562
    %v691 = vunpack.c.l.b16 %v563
    %v692 = vunpack.c.l.b16 %v564
    %v693 = vunpack.c.l.b16 %v565
    %v694 = vunpack.c.l.b16 %v566
    %v695 = vunpack.c.l.b16 %v567
    %v696 = vunpack.c.l.b16 %v568
    %v697 = vunpack.c.l.b16 %v569
    %v698 = vpack.c.b16 %v635, %v634
    %v699 = vpack.c.b16 %v637, %v636
    %v700 = vpack.c.b16 %v639, %v638
    %v701 = vpack.c.b16 %v641, %v640
    %v702 = vpack.c.b16 %v643, %v642
    %v703 = vpack.c.b16 %v645, %v644
    %v704 = vpack.c.b16 %v647, %v646
    %v705 = vpack.c.b16 %v649, %v648
    %v706 = vpack.c.b16 %v651, %v650
    %v707 = vpack.c.b16 %v653, %v652
    %v708 = vpack.c.b16 %v655, %v654
    %v709 = vpack.c.b16 %v657, %v656
    %v710 = vpack.c.b16 %v659, %v658
    %v711 = vpack.c.b16 %v661, %v660
    %v712 = vpack.c.b16 %v663, %v662
    %v713 = vpack.c.b16 %v665, %v664
    %v714 = vpack.c.b16 %v667, %v666
    %v715 = vpack.c.b16 %v669, %v668
    %v716 = vpack.c.b16 %v671, %v670
    %v717 = vpack.c.b16 %v673, %v672
    %v718 = vpack.c.b16 %v675, %v674
    %v719 = vpack.c.b16 %v677, %v676
    %v720 = vpack.c.b16 %v679, %v678
    %v721 = vpack.c.b16 %v681, %v680
    %v722 = vpack.c.b16 %v683, %v682
    %v723 = vpack.c.b16 %v685, %v684
    %v724 = vpack.c.b16 %v687, %v686
    %v725 = vpack.c.b16 %v689, %v688
    %v726 = vpack.c.b16 %v691, %v690
    %v727 = vpack.c.b16 %v693, %v692
    %v728 = vpack.c.b16 %v695, %v694
    %v729 = vpack.c.b16 %v697, %v696
    %762 = vmatprep.subr.bf16.mxu0 0
    %763 = vmatpush1.bf16.msra.mxu0 %v698
    %764 = vmatprep.subr.bf16.mxu0 0
    %765 = vmatpush1.bf16.msra.mxu0 %v699
    %766 = vmatprep.subr.bf16.mxu0 0
    %767 = vmatpush1.bf16.msra.mxu0 %v700
    %768 = vmatprep.subr.bf16.mxu0 0
    %769 = vmatpush1.bf16.msra.mxu0 %v701
    %770 = vmatprep.subr.bf16.mxu0 0
    %771 = vmatpush1.bf16.msra.mxu0 %v702
    %772 = vmatprep.subr.bf16.mxu0 0
    %773 = vmatpush1.bf16.msra.mxu0 %v703
    %774 = vmatprep.subr.bf16.mxu0 0
    %775 = vmatpush1.bf16.msra.mxu0 %v704
    %776 = vmatprep.subr.bf16.mxu0 0
    %777 = vmatpush1.bf16.msra.mxu0 %v705
    %778 = vmatprep.subr.bf16.mxu0 0
    %779 = vmatpush1.bf16.msra.mxu0 %v706
    %780 = vmatprep.subr.bf16.mxu0 0
    %781 = vmatpush1.bf16.msra.mxu0 %v707
    %782 = vmatprep.subr.bf16.mxu0 0
    %783 = vmatpush1.bf16.msra.mxu0 %v708
    %784 = vmatprep.subr.bf16.mxu0 0
    %785 = vmatpush1.bf16.msra.mxu0 %v709
    %786 = vmatprep.subr.bf16.mxu0 0
    %787 = vmatpush1.bf16.msra.mxu0 %v710
    %788 = vmatprep.subr.bf16.mxu0 0
    %789 = vmatpush1.bf16.msra.mxu0 %v711
    %790 = vmatprep.subr.bf16.mxu0 0
    %791 = vmatpush1.bf16.msra.mxu0 %v712
    %792 = vmatprep.subr.bf16.mxu0 0
    %793 = vmatpush1.bf16.msra.mxu0 %v713
    %794 = vmatprep.mubr.bf16.mxu0 %v499
    %795 = vmatmul.mubr.bf16.gmra.mrb[0].mxu0 %v498
    %v796 = vpop.f32.mrb[0].mxu0
    %v797 = vadd.f32 0.0, %v796
    %v798 = vpop.f32.mrb[0].mxu0
    %v799 = vpop.f32.mrb[0].mxu0
    %v800 = vadd.f32 0.0, %v799
    %v801 = vpop.f32.mrb[0].mxu0
    %802 = vmatprep.mubr.bf16.mxu0 %v503
    %803 = vmatmul.mubr.bf16.gmra.mrb[0].mxu0 %v502
    %v804 = vpop.f32.mrb[0].mxu0
    %v805 = vadd.f32 0.0, %v804
    %v806 = vpop.f32.mrb[0].mxu0
    %v807 = vpop.f32.mrb[0].mxu0
    %v808 = vadd.f32 0.0, %v807
    %v809 = vpop.f32.mrb[0].mxu0
    %810 = vdwg.mxu0
    %811 = vmatprep.subr.bf16.mxu0 0
    %812 = vmatpush1.bf16.msra.mxu0 %v714
    %813 = vmatprep.subr.bf16.mxu0 0
    %814 = vmatpush1.bf16.msra.mxu0 %v715
    %815 = vmatprep.subr.bf16.mxu0 0
    %816 = vmatpush1.bf16.msra.mxu0 %v716
    %817 = vmatprep.subr.bf16.mxu0 0
    %818 = vmatpush1.bf16.msra.mxu0 %v717
    %819 = vmatprep.subr.bf16.mxu0 0
    %820 = vmatpush1.bf16.msra.mxu0 %v718
    %821 = vmatprep.subr.bf16.mxu0 0
    %822 = vmatpush1.bf16.msra.mxu0 %v719
    %823 = vmatprep.subr.bf16.mxu0 0
    %824 = vmatpush1.bf16.msra.mxu0 %v720
    %825 = vmatprep.subr.bf16.mxu0 0
    %826 = vmatpush1.bf16.msra.mxu0 %v721
    %827 = vmatprep.subr.bf16.mxu0 0
    %828 = vmatpush1.bf16.msra.mxu0 %v722
    %829 = vmatprep.subr.bf16.mxu0 0
    %830 = vmatpush1.bf16.msra.mxu0 %v723
    %831 = vmatprep.subr.bf16.mxu0 0
    %832 = vmatpush1.bf16.msra.mxu0 %v724
    %833 = vmatprep.subr.bf16.mxu0 0
    %834 = vmatpush1.bf16.msra.mxu0 %v725
    %835 = vmatprep.subr.bf16.mxu0 0
    %836 = vmatpush1.bf16.msra.mxu0 %v726
    %837 = vmatprep.subr.bf16.mxu0 0
    %838 = vmatpush1.bf16.msra.mxu0 %v727
    %839 = vmatprep.subr.bf16.mxu0 0
    %840 = vmatpush1.bf16.msra.mxu0 %v728
    %841 = vmatprep.subr.bf16.mxu0 0
    %842 = vmatpush1.bf16.msra.mxu0 %v729
    %843 = vmatprep.mubr.bf16.mxu0 %v501
    %844 = vmatmul.mubr.bf16.gmra.mrb[0].mxu0 %v500
    %v845 = vpop.f32.mrb[0].mxu0
    %v846 = vadd.f32 %v797, %v845
    %v847 = vpop.f32.mrb[0].mxu0
    %v848 = vpop.f32.mrb[0].mxu0
    %v849 = vadd.f32 %v800, %v848
    %v850 = vpop.f32.mrb[0].mxu0
    %851 = vmatprep.mubr.bf16.mxu0 %v505
    %852 = vmatmul.mubr.bf16.gmra.mrb[0].mxu0 %v504
    %v853 = vpop.f32.mrb[0].mxu0
    %v854 = vadd.f32 %v805, %v853
    %v855 = vpop.f32.mrb[0].mxu0
    %v856 = vpop.f32.mrb[0].mxu0
    %v857 = vadd.f32 %v808, %v856
    %v858 = vpop.f32.mrb[0].mxu0
    %859 = vdwg.mxu0
    %v860 = vadd.f32 %v494, %v846
    %v861 = vadd.f32 %v495, %v849
    %v862 = vadd.f32 %v496, %v854
    %v863 = vadd.f32 %v497, %v857
    %864 = vst [vmem:[#allocation2] sm:$0xff] %v860
    %865 = vst [vmem:[#allocation2 + $0x8] sm:$0xff] %v861
    %866 = vst [vmem:[#allocation2 + $0x10] sm:$0xff] %v862
    %867 = vst [vmem:[#allocation2 + $0x18] sm:$0xff] %v863
    // Predicated region
    $region38: #{tpu_custom_call.1} parent=1 // pred_check
      %p868 = pneg %p63
    $region39: #{tpu_custom_call.1} parent=1 // pred_check_branch
      %870 = sbr.rel (%p868) target = $region41
    $region40: #{tpu_custom_call.1} parent=1 // pred_region
      %v871 = vld [vmem:[#allocation2] sm:$0xff]
      %v872 = vld [vmem:[#allocation2 + $0x8] sm:$0xff]
      %v873 = vld [vmem:[#allocation2 + $0x10] sm:$0xff]
      %v874 = vld [vmem:[#allocation2 + $0x18] sm:$0xff]
      %875 = vst [vmem:[#allocation9] sm:$0xff] %v871
      %876 = vst [vmem:[#allocation9 + $0x8] sm:$0xff] %v872
      %877 = vst [vmem:[#allocation9 + $0x10] sm:$0xff] %v873
      %878 = vst [vmem:[#allocation9 + $0x18] sm:$0xff] %v874
    $region41: #{tpu_custom_call.1} parent=1 // pred_fallthru
      _
    // Predicated region
    $region42: #{tpu_custom_call.1} parent=1 // pred_check
      _
    $region43: #{tpu_custom_call.1} parent=1 // pred_check_branch
      %880 = sbr.rel (0) target = $region45
    $region44: #{tpu_custom_call.1} parent=1 // pred_region
      %s882 = ssub.s32 512, 512
      %883 = vsyncadd [#allocation5], %s882
      %s884 = sshll.u32 [#allocation9], 4
      %s885 = int_to_ptr.vmem [resolvable:$true] %s884
      %890 = dma.vmem_to_hbm [thread:$0]  %s885, 512, %s5, [#allocation5], 128, 128, 8
    $region45: #{tpu_custom_call.1} parent=1 // pred_fallthru
      _
    // Predicated region
    $region46: #{tpu_custom_call.1} parent=1 // pred_check
      _
    $region47: #{tpu_custom_call.1} parent=1 // pred_check_branch
      %892 = sbr.rel (0) target = $region49
    $region48: #{tpu_custom_call.1} parent=1 // pred_region
      %893 = dma.done [#allocation5], 512
    $region49: #{tpu_custom_call.1} parent=1 // pred_fallthru
      _
    %894 = vsyncpa [#allocation4], 1
    %895 = vsyncpa [#allocation7], 1
    %896 = vsyncpa [#allocation5], 1

</llo_original>
